<compile_context>
chip_gen: v5e
topology: v5e:2x2
jax: 0.10.0
libtpu: 0.0.40
codegen_flags: <defaults>
</compile_context>

<pallas_src>
from functools import partial

import jax
import jax.numpy as jnp
from jax import lax
from jax.experimental import pallas as pl
from jax.experimental.pallas import tpu as pltpu

LANE = 128                         # TPU lane width; feature dims padded to this
_VMEM_LIMIT = 48 * 1024 * 1024     # above scoped defaults, below v7x physical


def _cparams(dims):
    return pltpu.CompilerParams(dimension_semantics=dims,
                                vmem_limit_bytes=_VMEM_LIMIT)


def _round_up(n, m):
    return ((n + m - 1) // m) * m


def _pad2(x, rows, cols):
    return jnp.pad(x, ((0, rows - x.shape[0]), (0, cols - x.shape[1])))


# ---------------------------------------------------------------------------
# Fused encoder kernel: 3 GCN matmul stages + MLP branch + decoder row-norms
# ---------------------------------------------------------------------------

def _encoder_kernel(x_ref, adj_ref, wb_ref, wm_ref,
                    bi_ref, w1_ref, b1_ref, bns_ref, bnb_ref, w2_ref, b2_ref,
                    zc_ref, zt_ref, zc_nc_ref, zc_nr_ref, zt_nr_ref):
    f32 = jnp.float32
    bf16 = jnp.bfloat16

    # --- GCN branch (company nodes): z_c = adj @ (relu(adj @ (X @ Wb)) @ Wm) ---
    xw = jnp.dot(x_ref[...], wb_ref[...], preferred_element_type=f32)       # [Nc,H1P]
    hidden = jnp.maximum(
        jnp.dot(adj_ref[...], xw.astype(bf16), preferred_element_type=f32), 0.0)
    hw = jnp.dot(hidden.astype(bf16), wm_ref[...], preferred_element_type=f32)
    zc = jnp.dot(adj_ref[...], hw.astype(bf16), preferred_element_type=f32)  # [Nc,P]
    zc_ref[...] = zc

    # --- MLP branch (term nodes): z_t = BN_eval(relu(bi@W1+b1)) @ W21 + b21 ---
    h1 = jnp.dot(bi_ref[...], w1_ref[...], preferred_element_type=f32) + b1_ref[...]
    h1 = jnp.maximum(h1, 0.0)
    h1 = h1 * bns_ref[...] + bnb_ref[...]          # folded BatchNorm1d (eval mode)
    zt = (jnp.dot(h1.astype(bf16), w2_ref[...], preferred_element_type=f32)
          + b2_ref[...])                           # [Nt,P]
    zt_ref[...] = zt

    # --- squared row-norms, computed once here so the tiled decoder never
    #     transposes / reduces per output tile ---
    zcsq = zc * zc
    ztsq = zt * zt
    zc_nc_ref[...] = jnp.sum(zcsq, axis=-1, keepdims=True)          # [Nc,1]
    ones = jnp.ones((1, zcsq.shape[-1]), f32)
    dnums = (((1,), (1,)), ((), ()))
    zc_nr_ref[...] = lax.dot_general(ones, zcsq, dnums,
                                     preferred_element_type=f32)    # [1,Nc]
    zt_nr_ref[...] = lax.dot_general(ones, ztsq, dnums,
                                     preferred_element_type=f32)    # [1,Nt]


def fused_encoder(params, X, adj, bi_network):
    bf16 = jnp.bfloat16
    n_c = X.shape[0]
    n_t = bi_network.shape[0]
    P = params["w_mean_p"].shape[1]

    args = (X.astype(bf16), adj.astype(bf16),
            params["w_base_p"], params["w_mean_p"],
            bi_network.astype(bf16), params["w1_p"], params["b1_p"],
            params["bn_scale_p"], params["bn_shift_p"],
            params["w21_p"], params["b21_p"])

    out_shapes = (
        jax.ShapeDtypeStruct((n_c, P), jnp.float32),   # z_c padded slab
        jax.ShapeDtypeStruct((n_t, P), jnp.float32),   # z_t padded slab
        jax.ShapeDtypeStruct((n_c, 1), jnp.float32),   # |z_c|^2 as column
        jax.ShapeDtypeStruct((1, n_c), jnp.float32),   # |z_c|^2 as row
        jax.ShapeDtypeStruct((1, n_t), jnp.float32),   # |z_t|^2 as row
    )
    in_specs = [pl.BlockSpec(a.shape, lambda i: (0, 0)) for a in args]
    out_specs = tuple(pl.BlockSpec(s.shape, lambda i: (0, 0)) for s in out_shapes)

    return pl.pallas_call(
        _encoder_kernel,
        out_shape=out_shapes,
        grid=(1,),
        in_specs=in_specs,
        out_specs=out_specs,
        compiler_params=_cparams(("arbitrary",)),
    )(*args)


# ---------------------------------------------------------------------------
# Tiled edge decoder: one (tm, tn) output tile per grid point
# ---------------------------------------------------------------------------

def _decoder_kernel(zc_ref, zo_ref, cn_ref, on_ref, out_ref, *, a, b, eps):
    # ||zi - zj||^2 = |zi|^2 + |zj|^2 - 2 zi.zj   (padded zero lanes are inert)
    gram = lax.dot_general(zc_ref[...], zo_ref[...], (((1,), (1,)), ((), ())),
                           preferred_element_type=jnp.float32)      # [tm,tn]
    d2 = cn_ref[...] + on_ref[...] - 2.0 * gram
    d = jnp.sqrt(jnp.maximum(d2, 0.0))
    # sigmoid((1/(d+eps))/a - b) == sigmoid(1/(a*(d+eps)) - b); reciprocal on EUP.
    x = pl.reciprocal(a * (d + eps), approx=True)
    out_ref[...] = jax.nn.sigmoid(x - b).astype(out_ref.dtype)


def edge_decoder_block(zc_pad, zo_pad, cn_col, on_row, *, a, b, eps=1e-8,
                       tm=256, tn=512, out_dtype=jnp.float32):
    # out_dtype=jnp.bfloat16 halves the dominant N^2 HBM write if acceptable.
    n_r, P = zc_pad.shape
    n_o = zo_pad.shape[0]
    tm_e = n_r if n_r <= tm else tm          # full block for small problems
    tn_e = n_o if n_o <= tn else tn
    grid = (pl.cdiv(n_r, tm_e), pl.cdiv(n_o, tn_e))
    return pl.pallas_call(
        partial(_decoder_kernel, a=a, b=b, eps=eps),
        out_shape=jax.ShapeDtypeStruct((n_r, n_o), out_dtype),
        grid=grid,
        in_specs=[
            pl.BlockSpec((tm_e, P), lambda i, j: (i, 0)),   # z_c rows
            pl.BlockSpec((tn_e, P), lambda i, j: (j, 0)),   # "other" rows
            pl.BlockSpec((tm_e, 1), lambda i, j: (i, 0)),   # |z_c|^2 column
            pl.BlockSpec((1, tn_e), lambda i, j: (0, j)),   # |other|^2 row
        ],
        out_specs=pl.BlockSpec((tm_e, tn_e), lambda i, j: (i, j)),
        compiler_params=_cparams(("parallel", "parallel")),
    )(zc_pad, zo_pad, cn_col, on_row)


# ---------------------------------------------------------------------------
# Parameter init (deterministic, mirrors module __init__ shapes) + padding
# ---------------------------------------------------------------------------

def glorot_init(key, in_dim, out_dim):
    r = jnp.sqrt(6.0 / (in_dim + out_dim))
    return jax.random.uniform(key, (in_dim, out_dim), jnp.float32, -r, r)


def linear_init(key, in_dim, out_dim):
    kw, kb = jax.random.split(key)
    bound = 1.0 / jnp.sqrt(in_dim)
    w = jax.random.uniform(kw, (in_dim, out_dim), jnp.float32, -bound, bound)
    b = jax.random.uniform(kb, (1, out_dim), jnp.float32, -bound, bound)
    return w, b


def init_hetero_vgae_params(key, graph_dim, bipartite_dim, hidden1, hidden2,
                            bn_eps=1e-5):
    h1p = _round_up(hidden1, LANE)
    h2p = _round_up(hidden2, LANE)
    keys = jax.random.split(key, 6)

    w_base = glorot_init(keys[0], graph_dim, hidden1)
    w_mean = glorot_init(keys[1], hidden1, hidden2)
    # keys[2] (W_logstd) / keys[5] (fc22) unused: forward() never returns
    # logstd / logvar; concatenate their columns into w_mean_p / w21_p if needed.
    w1, b1 = linear_init(keys[3], bipartite_dim, hidden1)
    w21, b21 = linear_init(keys[4], hidden1, hidden2)

    # BatchNorm1d(hidden1) eval mode, folded to scale/shift.  Load real running
    # stats / affine params here for a trained checkpoint.
    gamma, beta = jnp.ones((hidden1,)), jnp.zeros((hidden1,))
    r_mean, r_var = jnp.zeros((hidden1,)), jnp.ones((hidden1,))
    bn_scale = gamma / jnp.sqrt(r_var + bn_eps)
    bn_shift = beta - r_mean * bn_scale

    bf16 = jnp.bfloat16
    return {
        "hidden2": hidden2,
        # zero-padded, bf16 matmul weights (lane-dense outputs, native MXU tiles)
        "w_base_p": _pad2(w_base, graph_dim, h1p).astype(bf16),
        "w_mean_p": _pad2(w_mean, h1p, h2p).astype(bf16),
        "w1_p": _pad2(w1, bipartite_dim, h1p).astype(bf16),
        "w21_p": _pad2(w21, h1p, h2p).astype(bf16),
        # f32 biases / folded BN
        "b1_p": _pad2(b1, 1, h1p),
        "b21_p": _pad2(b21, 1, h2p),
        "bn_scale_p": jnp.pad(bn_scale[None, :], ((0, 0), (0, h1p - hidden1)),
                              constant_values=1.0),
        "bn_shift_p": jnp.pad(bn_shift[None, :], ((0, 0), (0, h1p - hidden1))),
        "dec_a": 1.65,
        "dec_b": 10.0,
    }


# ---------------------------------------------------------------------------
# Forward
# ---------------------------------------------------------------------------

def hetero_vgae_forward(params, X, adj, bi_network):
    zc_pad, zt_pad, zc_nc, zc_nr, zt_nr = fused_encoder(params, X, adj, bi_network)
    h2 = params["hidden2"]
    a, b = float(params["dec_a"]), float(params["dec_b"])

    A_pred = edge_decoder_block(zc_pad, zc_pad, zc_nc, zc_nr, a=a, b=b)
    B_pred = edge_decoder_block(zc_pad, zt_pad, zc_nc, zt_nr, a=a, b=b)

    z_c = zc_pad[:, :h2]       # un-pad in the wrapper (tiny slices)
    z_t = zt_pad[:, :h2]
    return z_c, z_t, A_pred, B_pred


# ---------------------------------------------------------------------------

if __name__ == "__main__":
    N_c = 16            # company nodes
    N_t = 8             # term nodes (rows of bipartite network)
    graph_dim = 32
    bipartite_dim = 16
    hidden1 = 32
    hidden2 = 8

    key = jax.random.PRNGKey(0)
    k_p, k_x, k_a, k_b = jax.random.split(key, 4)

    params = init_hetero_vgae_params(k_p, graph_dim, bipartite_dim, hidden1, hidden2)

    X = jax.random.normal(k_x, (N_c, graph_dim), jnp.float32)
    adj_raw = (jax.random.uniform(k_a, (N_c, N_c)) > 0.7).astype(jnp.float32)
    adj = adj_raw + jnp.eye(N_c, dtype=jnp.float32)
    adj = adj / jnp.sum(adj, axis=-1, keepdims=True)     # row-normalized adjacency
    bi_network = jax.random.normal(k_b, (N_t, bipartite_dim), jnp.float32)

    # jit via closure so scalar hyper-params (dec_a/dec_b, hidden2) stay static.
    fwd = jax.jit(lambda x, a_, bi: hetero_vgae_forward(params, x, a_, bi))
    z_c, z_t, A_pred, B_pred = fwd(X, adj, bi_network)
    jax.block_until_ready((z_c, z_t, A_pred, B_pred))

    assert z_c.shape == (N_c, hidden2)
    assert z_t.shape == (N_t, hidden2)
    assert A_pred.shape == (N_c, N_c)
    assert B_pred.shape == (N_c, N_t)
    assert bool(jnp.all(jnp.isfinite(A_pred))) and bool(jnp.all(jnp.isfinite(B_pred)))
    assert bool(jnp.all((A_pred >= 0.0) & (A_pred <= 1.0)))
    assert bool(jnp.all((B_pred >= 0.0) & (B_pred <= 1.0)))

    print("KERNEL_OK")
</pallas_src>

<mosaic_0001>
module attributes {stable_mosaic.version = 11 : i64} {
  func.func @_decoder_kernel(%arg0: i32, %arg1: i32, %arg2: memref<16x128xf32, #tpu.memory_space<vmem>>, %arg3: memref<8x128xf32, #tpu.memory_space<vmem>>, %arg4: memref<16x1xf32, #tpu.memory_space<vmem>>, %arg5: memref<1x8xf32, #tpu.memory_space<vmem>>, %arg6: memref<16x8xf32, #tpu.memory_space<vmem>>) attributes {dimension_semantics = [#tpu.dimension_semantics<parallel>, #tpu.dimension_semantics<parallel>], iteration_bounds = array<i64: 1, 1>, scalar_prefetch = 0 : i64, scratch_operands = 0 : i64, tpu.core_type = #tpu.core_type<tc>, window_params = [{transform_indices = @transform_0, window_bounds = array<i64: 16, 128>}, {transform_indices = @transform_1, window_bounds = array<i64: 8, 128>}, {transform_indices = @transform_2, window_bounds = array<i64: 16, 1>}, {transform_indices = @transform_3, window_bounds = array<i64: 1, 8>}, {transform_indices = @transform_4, window_bounds = array<i64: 16, 8>}]} {
    %c0 = arith.constant 0 : index
    %c0_0 = arith.constant 0 : index
    %0 = vector.load %arg2[%c0, %c0_0] : memref<16x128xf32, #tpu.memory_space<vmem>>, vector<16x128xf32>
    %c0_1 = arith.constant 0 : index
    %c0_2 = arith.constant 0 : index
    %1 = vector.load %arg3[%c0_1, %c0_2] : memref<8x128xf32, #tpu.memory_space<vmem>>, vector<8x128xf32>
    %cst = arith.constant dense<0.000000e+00> : vector<16x8xf32>
    %2 = tpu.matmul %0, %1, %cst {dimension_numbers = #tpu.dot_dimension_numbers<[1], [1], [0], [0], [0, 0, 1, 0], [], []>} : vector<16x128xf32>, vector<8x128xf32>, vector<16x8xf32> -> vector<16x8xf32>
    %c0_3 = arith.constant 0 : index
    %c0_4 = arith.constant 0 : index
    %3 = vector.load %arg4[%c0_3, %c0_4] : memref<16x1xf32, #tpu.memory_space<vmem>>, vector<16x1xf32>
    %c0_5 = arith.constant 0 : index
    %c0_6 = arith.constant 0 : index
    %4 = vector.load %arg5[%c0_5, %c0_6] : memref<1x8xf32, #tpu.memory_space<vmem>>, vector<1x8xf32>
    %5 = vector.broadcast %3 : vector<16x1xf32> to vector<16x8xf32>
    %6 = vector.broadcast %4 : vector<1x8xf32> to vector<16x8xf32>
    %7 = arith.addf %5, %6 : vector<16x8xf32>
    %cst_7 = arith.constant 2.000000e+00 : f32
    %8 = vector.broadcast %cst_7 : f32 to vector<16x8xf32>
    %9 = arith.mulf %8, %2 : vector<16x8xf32>
    %10 = arith.subf %7, %9 : vector<16x8xf32>
    %cst_8 = arith.constant 0.000000e+00 : f32
    %11 = vector.broadcast %cst_8 : f32 to vector<16x8xf32>
    %12 = arith.maximumf %10, %11 : vector<16x8xf32>
    %13 = math.sqrt %12 : vector<16x8xf32>
    %cst_9 = arith.constant 9.99999993E-9 : f32
    %14 = vector.broadcast %cst_9 : f32 to vector<16x8xf32>
    %15 = arith.addf %13, %14 : vector<16x8xf32>
    %cst_10 = arith.constant 1.650000e+00 : f32
    %16 = vector.broadcast %cst_10 : f32 to vector<16x8xf32>
    %17 = arith.mulf %16, %15 : vector<16x8xf32>
    %18 = tpu.reciprocal %17 {approx = true} : vector<16x8xf32> -> vector<16x8xf32>
    %cst_11 = arith.constant 1.000000e+01 : f32
    %19 = vector.broadcast %cst_11 : f32 to vector<16x8xf32>
    %20 = arith.subf %18, %19 : vector<16x8xf32>
    %21 = arith.negf %20 : vector<16x8xf32>
    %22 = math.exp %21 : vector<16x8xf32>
    %cst_12 = arith.constant 1.000000e+00 : f32
    %23 = vector.broadcast %cst_12 : f32 to vector<16x8xf32>
    %24 = arith.addf %23, %22 : vector<16x8xf32>
    %25 = arith.divf %23, %24 : vector<16x8xf32>
    %c0_13 = arith.constant 0 : index
    %c0_14 = arith.constant 0 : index
    %26 = vector.load %arg6[%c0_13, %c0_14] : memref<16x8xf32, #tpu.memory_space<vmem>>, vector<16x8xf32>
    tpu.vector_store %arg6[%c0_13, %c0_14], %25 {strides = array<i32>} : memref<16x8xf32, #tpu.memory_space<vmem>>, vector<16x8xf32>,
    return
  }
  func.func @transform_0(%arg0: i32, %arg1: i32) -> (i32, i32) {
    %c0_i32 = arith.constant 0 : i32
    %c0_i32_0 = arith.constant 0 : i32
    return %arg0, %c0_i32 : i32, i32
  }
  func.func @transform_1(%arg0: i32, %arg1: i32) -> (i32, i32) {
    %c0_i32 = arith.constant 0 : i32
    %c0_i32_0 = arith.constant 0 : i32
    return %arg1, %c0_i32 : i32, i32
  }
  func.func @transform_2(%arg0: i32, %arg1: i32) -> (i32, i32) {
    %c0_i32 = arith.constant 0 : i32
    %c0_i32_0 = arith.constant 0 : i32
    return %arg0, %c0_i32 : i32, i32
  }
  func.func @transform_3(%arg0: i32, %arg1: i32) -> (i32, i32) {
    %c0_i32 = arith.constant 0 : i32
    %c0_i32_0 = arith.constant 0 : i32
    return %c0_i32, %arg1 : i32, i32
  }
  func.func @transform_4(%arg0: i32, %arg1: i32) -> (i32, i32) {
    %c0_i32 = arith.constant 0 : i32
    return %arg0, %arg1 : i32, i32
  }
}

module attributes {stable_mosaic.version = 11 : i64} {
  func.func @_encoder_kernel(%arg0: i32, %arg1: memref<16x32xbf16, #tpu.memory_space<vmem>>, %arg2: memref<16x16xbf16, #tpu.memory_space<vmem>>, %arg3: memref<32x128xbf16, #tpu.memory_space<vmem>>, %arg4: memref<128x128xbf16, #tpu.memory_space<vmem>>, %arg5: memref<8x16xbf16, #tpu.memory_space<vmem>>, %arg6: memref<16x128xbf16, #tpu.memory_space<vmem>>, %arg7: memref<1x128xf32, #tpu.memory_space<vmem>>, %arg8: memref<1x128xf32, #tpu.memory_space<vmem>>, %arg9: memref<1x128xf32, #tpu.memory_space<vmem>>, %arg10: memref<128x128xbf16, #tpu.memory_space<vmem>>, %arg11: memref<1x128xf32, #tpu.memory_space<vmem>>, %arg12: memref<16x128xf32, #tpu.memory_space<vmem>>, %arg13: memref<8x128xf32, #tpu.memory_space<vmem>>, %arg14: memref<16x1xf32, #tpu.memory_space<vmem>>, %arg15: memref<1x16xf32, #tpu.memory_space<vmem>>, %arg16: memref<1x8xf32, #tpu.memory_space<vmem>>) attributes {dimension_semantics = [#tpu.dimension_semantics<arbitrary>], iteration_bounds = array<i64: 1>, scalar_prefetch = 0 : i64, scratch_operands = 0 : i64, tpu.core_type = #tpu.core_type<tc>, window_params = [{pipeline_mode = #tpu.pipeline_mode<synchronous>, transform_indices = @transform_0, window_bounds = array<i64: 16, 32>}, {pipeline_mode = #tpu.pipeline_mode<synchronous>, transform_indices = @transform_1, window_bounds = array<i64: 16, 16>}, {pipeline_mode = #tpu.pipeline_mode<synchronous>, transform_indices = @transform_2, window_bounds = array<i64: 32, 128>}, {pipeline_mode = #tpu.pipeline_mode<synchronous>, transform_indices = @transform_3, window_bounds = array<i64: 128, 128>}, {pipeline_mode = #tpu.pipeline_mode<synchronous>, transform_indices = @transform_4, window_bounds = array<i64: 8, 16>}, {pipeline_mode = #tpu.pipeline_mode<synchronous>, transform_indices = @transform_5, window_bounds = array<i64: 16, 128>}, {pipeline_mode = #tpu.pipeline_mode<synchronous>, transform_indices = @transform_6, window_bounds = array<i64: 1, 128>}, {pipeline_mode = #tpu.pipeline_mode<synchronous>, transform_indices = @transform_7, window_bounds = array<i64: 1, 128>}, {pipeline_mode = #tpu.pipeline_mode<synchronous>, transform_indices = @transform_8, window_bounds = array<i64: 1, 128>}, {pipeline_mode = #tpu.pipeline_mode<synchronous>, transform_indices = @transform_9, window_bounds = array<i64: 128, 128>}, {pipeline_mode = #tpu.pipeline_mode<synchronous>, transform_indices = @transform_10, window_bounds = array<i64: 1, 128>}, {pipeline_mode = #tpu.pipeline_mode<synchronous>, transform_indices = @transform_11, window_bounds = array<i64: 16, 128>}, {pipeline_mode = #tpu.pipeline_mode<synchronous>, transform_indices = @transform_12, window_bounds = array<i64: 8, 128>}, {pipeline_mode = #tpu.pipeline_mode<synchronous>, transform_indices = @transform_13, window_bounds = array<i64: 16, 1>}, {pipeline_mode = #tpu.pipeline_mode<synchronous>, transform_indices = @transform_14, window_bounds = array<i64: 1, 16>}, {pipeline_mode = #tpu.pipeline_mode<synchronous>, transform_indices = @transform_15, window_bounds = array<i64: 1, 8>}]} {
    %c0 = arith.constant 0 : index
    %c0_0 = arith.constant 0 : index
    %0 = vector.load %arg1[%c0, %c0_0] : memref<16x32xbf16, #tpu.memory_space<vmem>>, vector<16x32xbf16>
    %c0_1 = arith.constant 0 : index
    %c0_2 = arith.constant 0 : index
    %1 = vector.load %arg3[%c0_1, %c0_2] : memref<32x128xbf16, #tpu.memory_space<vmem>>, vector<32x128xbf16>
    %cst = arith.constant dense<0.000000e+00> : vector<16x128xf32>
    %2 = tpu.matmul %0, %1, %cst {dimension_numbers = #tpu.dot_dimension_numbers<[1], [0], [0], [1], [0, 0, 1, 1], [], []>} : vector<16x32xbf16>, vector<32x128xbf16>, vector<16x128xf32> -> vector<16x128xf32>
    %c0_3 = arith.constant 0 : index
    %c0_4 = arith.constant 0 : index
    %3 = vector.load %arg2[%c0_3, %c0_4] : memref<16x16xbf16, #tpu.memory_space<vmem>>, vector<16x16xbf16>
    %4 = arith.truncf %2 : vector<16x128xf32> to vector<16x128xbf16>
    %cst_5 = arith.constant dense<0.000000e+00> : vector<16x128xf32>
    %5 = tpu.matmul %3, %4, %cst_5 {dimension_numbers = #tpu.dot_dimension_numbers<[1], [0], [0], [1], [0, 0, 1, 1], [], []>} : vector<16x16xbf16>, vector<16x128xbf16>, vector<16x128xf32> -> vector<16x128xf32>
    %cst_6 = arith.constant 0.000000e+00 : f32
    %6 = vector.broadcast %cst_6 : f32 to vector<16x128xf32>
    %7 = arith.maximumf %5, %6 : vector<16x128xf32>
    %8 = arith.truncf %7 : vector<16x128xf32> to vector<16x128xbf16>
    %c0_7 = arith.constant 0 : index
    %c0_8 = arith.constant 0 : index
    %9 = vector.load %arg4[%c0_7, %c0_8] : memref<128x128xbf16, #tpu.memory_space<vmem>>, vector<128x128xbf16>
    %cst_9 = arith.constant dense<0.000000e+00> : vector<16x128xf32>
    %10 = tpu.matmul %8, %9, %cst_9 {dimension_numbers = #tpu.dot_dimension_numbers<[1], [0], [0], [1], [0, 0, 1, 1], [], []>} : vector<16x128xbf16>, vector<128x128xbf16>, vector<16x128xf32> -> vector<16x128xf32>
    %c0_10 = arith.constant 0 : index
    %c0_11 = arith.constant 0 : index
    %11 = vector.load %arg2[%c0_10, %c0_11] : memref<16x16xbf16, #tpu.memory_space<vmem>>, vector<16x16xbf16>
    %12 = arith.truncf %10 : vector<16x128xf32> to vector<16x128xbf16>
    %cst_12 = arith.constant dense<0.000000e+00> : vector<16x128xf32>
    %13 = tpu.matmul %11, %12, %cst_12 {dimension_numbers = #tpu.dot_dimension_numbers<[1], [0], [0], [1], [0, 0, 1, 1], [], []>} : vector<16x16xbf16>, vector<16x128xbf16>, vector<16x128xf32> -> vector<16x128xf32>
    %c0_13 = arith.constant 0 : index
    %c0_14 = arith.constant 0 : index
    %14 = vector.load %arg12[%c0_13, %c0_14] : memref<16x128xf32, #tpu.memory_space<vmem>>, vector<16x128xf32>
    tpu.vector_store %arg12[%c0_13, %c0_14], %13 {strides = array<i32>} : memref<16x128xf32, #tpu.memory_space<vmem>>, vector<16x128xf32>,
    %c0_15 = arith.constant 0 : index
    %c0_16 = arith.constant 0 : index
    %15 = vector.load %arg5[%c0_15, %c0_16] : memref<8x16xbf16, #tpu.memory_space<vmem>>, vector<8x16xbf16>
    %c0_17 = arith.constant 0 : index
    %c0_18 = arith.constant 0 : index
    %16 = vector.load %arg6[%c0_17, %c0_18] : memref<16x128xbf16, #tpu.memory_space<vmem>>, vector<16x128xbf16>
    %cst_19 = arith.constant dense<0.000000e+00> : vector<8x128xf32>
    %17 = tpu.matmul %15, %16, %cst_19 {dimension_numbers = #tpu.dot_dimension_numbers<[1], [0], [0], [1], [0, 0, 1, 1], [], []>} : vector<8x16xbf16>, vector<16x128xbf16>, vector<8x128xf32> -> vector<8x128xf32>
    %c0_20 = arith.constant 0 : index
    %c0_21 = arith.constant 0 : index
    %18 = vector.load %arg7[%c0_20, %c0_21] : memref<1x128xf32, #tpu.memory_space<vmem>>, vector<1x128xf32>
    %19 = vector.broadcast %18 : vector<1x128xf32> to vector<8x128xf32>
    %20 = arith.addf %17, %19 : vector<8x128xf32>
    %cst_22 = arith.constant 0.000000e+00 : f32
    %21 = vector.broadcast %cst_22 : f32 to vector<8x128xf32>
    %22 = arith.maximumf %20, %21 : vector<8x128xf32>
    %c0_23 = arith.constant 0 : index
    %c0_24 = arith.constant 0 : index
    %23 = vector.load %arg8[%c0_23, %c0_24] : memref<1x128xf32, #tpu.memory_space<vmem>>, vector<1x128xf32>
    %24 = vector.broadcast %23 : vector<1x128xf32> to vector<8x128xf32>
    %25 = arith.mulf %22, %24 : vector<8x128xf32>
    %c0_25 = arith.constant 0 : index
    %c0_26 = arith.constant 0 : index
    %26 = vector.load %arg9[%c0_25, %c0_26] : memref<1x128xf32, #tpu.memory_space<vmem>>, vector<1x128xf32>
    %27 = vector.broadcast %26 : vector<1x128xf32> to vector<8x128xf32>
    %28 = arith.addf %25, %27 : vector<8x128xf32>
    %29 = arith.truncf %28 : vector<8x128xf32> to vector<8x128xbf16>
    %c0_27 = arith.constant 0 : index
    %c0_28 = arith.constant 0 : index
    %30 = vector.load %arg10[%c0_27, %c0_28] : memref<128x128xbf16, #tpu.memory_space<vmem>>, vector<128x128xbf16>
    %cst_29 = arith.constant dense<0.000000e+00> : vector<8x128xf32>
    %31 = tpu.matmul %29, %30, %cst_29 {dimension_numbers = #tpu.dot_dimension_numbers<[1], [0], [0], [1], [0, 0, 1, 1], [], []>} : vector<8x128xbf16>, vector<128x128xbf16>, vector<8x128xf32> -> vector<8x128xf32>
    %c0_30 = arith.constant 0 : index
    %c0_31 = arith.constant 0 : index
    %32 = vector.load %arg11[%c0_30, %c0_31] : memref<1x128xf32, #tpu.memory_space<vmem>>, vector<1x128xf32>
    %33 = vector.broadcast %32 : vector<1x128xf32> to vector<8x128xf32>
    %34 = arith.addf %31, %33 : vector<8x128xf32>
    %c0_32 = arith.constant 0 : index
    %c0_33 = arith.constant 0 : index
    %35 = vector.load %arg13[%c0_32, %c0_33] : memref<8x128xf32, #tpu.memory_space<vmem>>, vector<8x128xf32>
    tpu.vector_store %arg13[%c0_32, %c0_33], %34 {strides = array<i32>} : memref<8x128xf32, #tpu.memory_space<vmem>>, vector<8x128xf32>,
    %36 = arith.mulf %13, %13 : vector<16x128xf32>
    %37 = arith.mulf %34, %34 : vector<8x128xf32>
    %cst_34 = arith.constant dense<0.000000e+00> : vector<16xf32>
    %38 = vector.multi_reduction <add>, %36, %cst_34 [1] : vector<16x128xf32> to vector<16xf32>
    %39 = vector.shape_cast %38 : vector<16xf32> to vector<16x1xf32>
    %c0_35 = arith.constant 0 : index
    %c0_36 = arith.constant 0 : index
    %40 = vector.load %arg14[%c0_35, %c0_36] : memref<16x1xf32, #tpu.memory_space<vmem>>, vector<16x1xf32>
    tpu.vector_store %arg14[%c0_35, %c0_36], %39 {strides = array<i32>} : memref<16x1xf32, #tpu.memory_space<vmem>>, vector<16x1xf32>,
    %cst_37 = arith.constant 1.000000e+00 : f32
    %41 = vector.broadcast %cst_37 : f32 to vector<1x128xf32>
    %cst_38 = arith.constant dense<0.000000e+00> : vector<1x16xf32>
    %42 = tpu.matmul %41, %36, %cst_38 {dimension_numbers = #tpu.dot_dimension_numbers<[1], [1], [0], [0], [0, 0, 1, 0], [], []>} : vector<1x128xf32>, vector<16x128xf32>, vector<1x16xf32> -> vector<1x16xf32>
    %c0_39 = arith.constant 0 : index
    %c0_40 = arith.constant 0 : index
    %43 = vector.load %arg15[%c0_39, %c0_40] : memref<1x16xf32, #tpu.memory_space<vmem>>, vector<1x16xf32>
    tpu.vector_store %arg15[%c0_39, %c0_40], %42 {strides = array<i32>} : memref<1x16xf32, #tpu.memory_space<vmem>>, vector<1x16xf32>,
    %cst_41 = arith.constant dense<0.000000e+00> : vector<1x8xf32>
    %44 = tpu.matmul %41, %37, %cst_41 {dimension_numbers = #tpu.dot_dimension_numbers<[1], [1], [0], [0], [0, 0, 1, 0], [], []>} : vector<1x128xf32>, vector<8x128xf32>, vector<1x8xf32> -> vector<1x8xf32>
    %c0_42 = arith.constant 0 : index
    %c0_43 = arith.constant 0 : index
    %45 = vector.load %arg16[%c0_42, %c0_43] : memref<1x8xf32, #tpu.memory_space<vmem>>, vector<1x8xf32>
    tpu.vector_store %arg16[%c0_42, %c0_43], %44 {strides = array<i32>} : memref<1x8xf32, #tpu.memory_space<vmem>>, vector<1x8xf32>,
    return
  }
  func.func @transform_0(%arg0: i32) -> (i32, i32) {
    %c0_i32 = arith.constant 0 : i32
    %c0_i32_0 = arith.constant 0 : i32
    %c0_i32_1 = arith.constant 0 : i32
    return %c0_i32, %c0_i32_0 : i32, i32
  }
  func.func @transform_1(%arg0: i32) -> (i32, i32) {
    %c0_i32 = arith.constant 0 : i32
    %c0_i32_0 = arith.constant 0 : i32
    %c0_i32_1 = arith.constant 0 : i32
    return %c0_i32, %c0_i32_0 : i32, i32
  }
  func.func @transform_2(%arg0: i32) -> (i32, i32) {
    %c0_i32 = arith.constant 0 : i32
    %c0_i32_0 = arith.constant 0 : i32
    %c0_i32_1 = arith.constant 0 : i32
    return %c0_i32, %c0_i32_0 : i32, i32
  }
  func.func @transform_3(%arg0: i32) -> (i32, i32) {
    %c0_i32 = arith.constant 0 : i32
    %c0_i32_0 = arith.constant 0 : i32
    %c0_i32_1 = arith.constant 0 : i32
    return %c0_i32, %c0_i32_0 : i32, i32
  }
  func.func @transform_4(%arg0: i32) -> (i32, i32) {
    %c0_i32 = arith.constant 0 : i32
    %c0_i32_0 = arith.constant 0 : i32
    %c0_i32_1 = arith.constant 0 : i32
    return %c0_i32, %c0_i32_0 : i32, i32
  }
  func.func @transform_5(%arg0: i32) -> (i32, i32) {
    %c0_i32 = arith.constant 0 : i32
    %c0_i32_0 = arith.constant 0 : i32
    %c0_i32_1 = arith.constant 0 : i32
    return %c0_i32, %c0_i32_0 : i32, i32
  }
  func.func @transform_6(%arg0: i32) -> (i32, i32) {
    %c0_i32 = arith.constant 0 : i32
    %c0_i32_0 = arith.constant 0 : i32
    %c0_i32_1 = arith.constant 0 : i32
    return %c0_i32, %c0_i32_0 : i32, i32
  }
  func.func @transform_7(%arg0: i32) -> (i32, i32) {
    %c0_i32 = arith.constant 0 : i32
    %c0_i32_0 = arith.constant 0 : i32
    %c0_i32_1 = arith.constant 0 : i32
    return %c0_i32, %c0_i32_0 : i32, i32
  }
  func.func @transform_8(%arg0: i32) -> (i32, i32) {
    %c0_i32 = arith.constant 0 : i32
    %c0_i32_0 = arith.constant 0 : i32
    %c0_i32_1 = arith.constant 0 : i32
    return %c0_i32, %c0_i32_0 : i32, i32
  }
  func.func @transform_9(%arg0: i32) -> (i32, i32) {
    %c0_i32 = arith.constant 0 : i32
    %c0_i32_0 = arith.constant 0 : i32
    %c0_i32_1 = arith.constant 0 : i32
    return %c0_i32, %c0_i32_0 : i32, i32
  }
  func.func @transform_10(%arg0: i32) -> (i32, i32) {
    %c0_i32 = arith.constant 0 : i32
    %c0_i32_0 = arith.constant 0 : i32
    %c0_i32_1 = arith.constant 0 : i32
    return %c0_i32, %c0_i32_0 : i32, i32
  }
  func.func @transform_11(%arg0: i32) -> (i32, i32) {
    %c0_i32 = arith.constant 0 : i32
    %c0_i32_0 = arith.constant 0 : i32
    %c0_i32_1 = arith.constant 0 : i32
    return %c0_i32, %c0_i32_0 : i32, i32
  }
  func.func @transform_12(%arg0: i32) -> (i32, i32) {
    %c0_i32 = arith.constant 0 : i32
    %c0_i32_0 = arith.constant 0 : i32
    %c0_i32_1 = arith.constant 0 : i32
    return %c0_i32, %c0_i32_0 : i32, i32
  }
  func.func @transform_13(%arg0: i32) -> (i32, i32) {
    %c0_i32 = arith.constant 0 : i32
    %c0_i32_0 = arith.constant 0 : i32
    %c0_i32_1 = arith.constant 0 : i32
    return %c0_i32, %c0_i32_0 : i32, i32
  }
  func.func @transform_14(%arg0: i32) -> (i32, i32) {
    %c0_i32 = arith.constant 0 : i32
    %c0_i32_0 = arith.constant 0 : i32
    %c0_i32_1 = arith.constant 0 : i32
    return %c0_i32, %c0_i32_0 : i32, i32
  }
  func.func @transform_15(%arg0: i32) -> (i32, i32) {
    %c0_i32 = arith.constant 0 : i32
    %c0_i32_0 = arith.constant 0 : i32
    %c0_i32_1 = arith.constant 0 : i32
    return %c0_i32, %c0_i32_0 : i32, i32
  }
}

module attributes {stable_mosaic.version = 11 : i64} {
  func.func @_decoder_kernel(%arg0: i32, %arg1: i32, %arg2: memref<16x128xf32, #tpu.memory_space<vmem>>, %arg3: memref<16x128xf32, #tpu.memory_space<vmem>>, %arg4: memref<16x1xf32, #tpu.memory_space<vmem>>, %arg5: memref<1x16xf32, #tpu.memory_space<vmem>>, %arg6: memref<16x16xf32, #tpu.memory_space<vmem>>) attributes {dimension_semantics = [#tpu.dimension_semantics<parallel>, #tpu.dimension_semantics<parallel>], iteration_bounds = array<i64: 1, 1>, scalar_prefetch = 0 : i64, scratch_operands = 0 : i64, tpu.core_type = #tpu.core_type<tc>, window_params = [{transform_indices = @transform_0, window_bounds = array<i64: 16, 128>}, {transform_indices = @transform_1, window_bounds = array<i64: 16, 128>}, {transform_indices = @transform_2, window_bounds = array<i64: 16, 1>}, {transform_indices = @transform_3, window_bounds = array<i64: 1, 16>}, {transform_indices = @transform_4, window_bounds = array<i64: 16, 16>}]} {
    %c0 = arith.constant 0 : index
    %c0_0 = arith.constant 0 : index
    %0 = vector.load %arg2[%c0, %c0_0] : memref<16x128xf32, #tpu.memory_space<vmem>>, vector<16x128xf32>
    %c0_1 = arith.constant 0 : index
    %c0_2 = arith.constant 0 : index
    %1 = vector.load %arg3[%c0_1, %c0_2] : memref<16x128xf32, #tpu.memory_space<vmem>>, vector<16x128xf32>
    %cst = arith.constant dense<0.000000e+00> : vector<16x16xf32>
    %2 = tpu.matmul %0, %1, %cst {dimension_numbers = #tpu.dot_dimension_numbers<[1], [1], [0], [0], [0, 0, 1, 0], [], []>} : vector<16x128xf32>, vector<16x128xf32>, vector<16x16xf32> -> vector<16x16xf32>
    %c0_3 = arith.constant 0 : index
    %c0_4 = arith.constant 0 : index
    %3 = vector.load %arg4[%c0_3, %c0_4] : memref<16x1xf32, #tpu.memory_space<vmem>>, vector<16x1xf32>
    %c0_5 = arith.constant 0 : index
    %c0_6 = arith.constant 0 : index
    %4 = vector.load %arg5[%c0_5, %c0_6] : memref<1x16xf32, #tpu.memory_space<vmem>>, vector<1x16xf32>
    %5 = vector.broadcast %3 : vector<16x1xf32> to vector<16x16xf32>
    %6 = vector.broadcast %4 : vector<1x16xf32> to vector<16x16xf32>
    %7 = arith.addf %5, %6 : vector<16x16xf32>
    %cst_7 = arith.constant 2.000000e+00 : f32
    %8 = vector.broadcast %cst_7 : f32 to vector<16x16xf32>
    %9 = arith.mulf %8, %2 : vector<16x16xf32>
    %10 = arith.subf %7, %9 : vector<16x16xf32>
    %cst_8 = arith.constant 0.000000e+00 : f32
    %11 = vector.broadcast %cst_8 : f32 to vector<16x16xf32>
    %12 = arith.maximumf %10, %11 : vector<16x16xf32>
    %13 = math.sqrt %12 : vector<16x16xf32>
    %cst_9 = arith.constant 9.99999993E-9 : f32
    %14 = vector.broadcast %cst_9 : f32 to vector<16x16xf32>
    %15 = arith.addf %13, %14 : vector<16x16xf32>
    %cst_10 = arith.constant 1.650000e+00 : f32
    %16 = vector.broadcast %cst_10 : f32 to vector<16x16xf32>
    %17 = arith.mulf %16, %15 : vector<16x16xf32>
    %18 = tpu.reciprocal %17 {approx = true} : vector<16x16xf32> -> vector<16x16xf32>
    %cst_11 = arith.constant 1.000000e+01 : f32
    %19 = vector.broadcast %cst_11 : f32 to vector<16x16xf32>
    %20 = arith.subf %18, %19 : vector<16x16xf32>
    %21 = arith.negf %20 : vector<16x16xf32>
    %22 = math.exp %21 : vector<16x16xf32>
    %cst_12 = arith.constant 1.000000e+00 : f32
    %23 = vector.broadcast %cst_12 : f32 to vector<16x16xf32>
    %24 = arith.addf %23, %22 : vector<16x16xf32>
    %25 = arith.divf %23, %24 : vector<16x16xf32>
    %c0_13 = arith.constant 0 : index
    %c0_14 = arith.constant 0 : index
    %26 = vector.load %arg6[%c0_13, %c0_14] : memref<16x16xf32, #tpu.memory_space<vmem>>, vector<16x16xf32>
    tpu.vector_store %arg6[%c0_13, %c0_14], %25 {strides = array<i32>} : memref<16x16xf32, #tpu.memory_space<vmem>>, vector<16x16xf32>,
    return
  }
  func.func @transform_0(%arg0: i32, %arg1: i32) -> (i32, i32) {
    %c0_i32 = arith.constant 0 : i32
    %c0_i32_0 = arith.constant 0 : i32
    return %arg0, %c0_i32 : i32, i32
  }
  func.func @transform_1(%arg0: i32, %arg1: i32) -> (i32, i32) {
    %c0_i32 = arith.constant 0 : i32
    %c0_i32_0 = arith.constant 0 : i32
    return %arg1, %c0_i32 : i32, i32
  }
  func.func @transform_2(%arg0: i32, %arg1: i32) -> (i32, i32) {
    %c0_i32 = arith.constant 0 : i32
    %c0_i32_0 = arith.constant 0 : i32
    return %arg0, %c0_i32 : i32, i32
  }
  func.func @transform_3(%arg0: i32, %arg1: i32) -> (i32, i32) {
    %c0_i32 = arith.constant 0 : i32
    %c0_i32_0 = arith.constant 0 : i32
    return %c0_i32, %arg1 : i32, i32
  }
  func.func @transform_4(%arg0: i32, %arg1: i32) -> (i32, i32) {
    %c0_i32 = arith.constant 0 : i32
    return %arg0, %arg1 : i32, i32
  }
}

</mosaic_0001>

<llo_original>
// kernel: _lambda_.4
$region0: #{_lambda_.4}
  #allocation0 [shape = 'u32[]', space=smem, size = 0x4, offset = 0x4, fixed_abs, tag = 'smem constant byte address 0x4 - core index']
  #allocation1 [shape = 'u32[72,128]{1,0:T(1,128)}', space=vmem, size = 0x9000, scoped, tag = 'internal scratch']
  %s0 = inlined_call_operand.vmem [shape: f32[16,128], index: 0, kind: input, shape index: {}, may-alias: {0,1}]
  %s1 = inlined_call_operand.vmem [shape: f32[16,128], index: 1, kind: input, shape index: {}, may-alias: {0,1}]
  %s2 = inlined_call_operand.vmem [shape: f32[16,1], index: 2, kind: input, shape index: {}]
  %s3 = inlined_call_operand.vmem [shape: f32[1,16], index: 3, kind: input, shape index: {}]
  %s4 = inlined_call_operand.hbm [shape: f32[16,16], index: 4, kind: output, shape index: {}]
  %s5 = sld [smem:[#allocation0]]
  $region26: #{_lambda_.4} parent=0
    _
  %s7 = ssub.s32 1, %s5
  %s8 = scalar_select 0, %s7, %s5
  $region1: #{_lambda_.4} parent=0
    #allocation2 [shape = 'u8[8192]{0}', space=vmem, size = 0x2000, scoped, tag = 'output window, operand 0, single buffered']
    #allocation3 [shape = 's32[1]{0}', space=sflag, size = 0x4, scoped, tag = 'scoped memory for _lambda_.4']
    %9 = vsyncpa [#allocation3], 0
    // Predicated region
    $region2: #{_lambda_.4} parent=1 // pred_check
      _
    $region3: #{_lambda_.4} parent=1 // pred_check_branch
      %11 = sbr.rel (0) target = $region5
    $region4: #{_lambda_.4} parent=1 // pred_region
      _
    $region5: #{_lambda_.4} parent=1 // pred_fallthru
      _
    // Predicated region
    $region6: #{_lambda_.4} parent=1 // pred_check
      _
    $region7: #{_lambda_.4} parent=1 // pred_check_branch
      %13 = sbr.rel (0) target = $region9
    $region8: #{_lambda_.4} parent=1 // pred_region
      _
    $region9: #{_lambda_.4} parent=1 // pred_fallthru
      _
    // Predicated region
    $region10: #{_lambda_.4} parent=1 // pred_check
      _
    $region11: #{_lambda_.4} parent=1 // pred_check_branch
      %15 = sbr.rel (0) target = $region13
    $region12: #{_lambda_.4} parent=1 // pred_region
      _
    $region13: #{_lambda_.4} parent=1 // pred_fallthru
      _
    // Predicated region
    $region14: #{_lambda_.4} parent=1 // pred_check
      _
    $region15: #{_lambda_.4} parent=1 // pred_check_branch
      %17 = sbr.rel (0) target = $region17
    $region16: #{_lambda_.4} parent=1 // pred_region
      _
    $region17: #{_lambda_.4} parent=1 // pred_fallthru
      _
    %v18 = vld [vmem:[%s0] sm:$0xff]
    %v19 = vld [vmem:[%s0 + $0x8] sm:$0xff]
    %v20 = vld [vmem:[%s1] sm:$0xff]
    %v21 = vld [vmem:[%s1 + $0x8] sm:$0xff]
    %22 = vmatpush.xpose.msra.mxu0 0.0
    %23 = vmatpush.xpose.msra.mxu0 0.0
    %24 = vmatpush.xpose.msra.mxu0 0.0
    %25 = vmatpush.xpose.msra.mxu0 0.0
    %26 = vmatpush.xpose.msra.mxu0 0.0
    %27 = vmatpush.xpose.msra.mxu0 0.0
    %28 = vmatpush.xpose.msra.mxu0 0.0
    %29 = vmatpush.xpose.msra.mxu0 0.0
    %30 = vmatpush.xpose.msra.mxu0 0.0
    %31 = vmatpush.xpose.msra.mxu0 0.0
    %32 = vmatpush.xpose.msra.mxu0 0.0
    %33 = vmatpush.xpose.msra.mxu0 0.0
    %34 = vmatpush.xpose.msra.mxu0 0.0
    %35 = vmatpush.xpose.msra.mxu0 0.0
    %36 = vmatpush.xpose.msra.mxu0 %v21
    %37 = vmatpush.xpose.msra.mxu0 %v20
    %38 = vmatmul.f32.gmra.mxu0 %v18
    %v39 = vpop.f32.mrf.mxu0
    %v40 = vadd.f32 0.0, %v39
    %41 = vmatmul.f32.gmra.mxu0 %v19
    %v42 = vpop.f32.mrf.mxu0
    %v43 = vadd.f32 0.0, %v42
    %44 = vdwg.mxu0
    %v45 = vld [vmem:[%s2] sm:$0xff]
    %v46 = vld [vmem:[%s2 + $0x8] sm:$0xff]
    %v47 = vld [vmem:[%s3] sm:$0x1]
    %49 = vset.pattern.permute.xlu0 0
    %50 = vperm.xlu0 %49, %v45
    %v51 = vpop.permute.xlu0 %50
    %54 = vset.pattern.permute.xlu0 0
    %55 = vperm.xlu0 %54, %v46
    %v56 = vpop.permute.xlu0 %55
    %v59 = vperm.slane %v47, 0
    %v61 = vadd.f32 %v51, %v59
    %v62 = vadd.f32 %v56, %v59
    %v63 = vmul.f32 %v40, 2.0
    %v64 = vmul.f32 %v43, 2.0
    %v65 = vsub.f32 %v61, %v63
    %v66 = vsub.f32 %v62, %v64
    %v67 = vmax.f32 %v65, 0.0
    %v68 = vmax.f32 %v66, 0.0
    %v69 = vrsqrt.pop %v67
    %v70 = vmul.f32 %v69, %v67
    %v71 = vmul.f32 %v70, %v69
    %v72 = vmul.f32 0.5, %v71
    %v73 = vsub.f32 1.5, %v72
    %v74 = vmul.f32 %v69, %v73
    %v75 = vmul.f32 %v67, %v74
    %vm76 = vcmp.eq.f32.partialorder %v67, inf
    %v77 = vsel %vm76, %v67, %v75
    %vm78 = vcmp.eq.f32.partialorder %v67, 0.0
    %v79 = vand.u32 %v67, 2147483648
    %v80 = vsel %vm78, %v79, %v77
    %v81 = vrsqrt.pop %v68
    %v82 = vmul.f32 %v81, %v68
    %v83 = vmul.f32 %v82, %v81
    %v84 = vmul.f32 0.5, %v83
    %v85 = vsub.f32 1.5, %v84
    %v86 = vmul.f32 %v81, %v85
    %v87 = vmul.f32 %v68, %v86
    %vm88 = vcmp.eq.f32.partialorder %v68, inf
    %v89 = vsel %vm88, %v68, %v87
    %vm90 = vcmp.eq.f32.partialorder %v68, 0.0
    %v91 = vand.u32 %v68, 2147483648
    %v92 = vsel %vm90, %v91, %v89
    %v93 = vadd.f32 %v80, 1e-08
    %v94 = vadd.f32 %v92, 1e-08
    %v95 = vmul.f32 %v93, 1.65
    %v96 = vmul.f32 %v94, 1.65
    %v97 = vrcp.pop %v95
    %v98 = vrcp.pop %v96
    %v99 = vsub.f32 %v97, 10.0
    %v100 = vsub.f32 %v98, 10.0
    %v101 = vxor.u32 %v99, 2147483648
    %v102 = vxor.u32 %v100, 2147483648
    %v103 = vmul.f32 %v101, 1.442695
    %v104 = vpow.pop %v103
    %v105 = vmul.f32 %v102, 1.442695
    %v106 = vpow.pop %v105
    %v107 = vadd.f32 %v104, 1.0
    %v108 = vadd.f32 %v106, 1.0
    %v109 = vrcp.pop %v107
    %v110 = vmul.f32 %v107, %v109
    %v111 = vsub.f32 1.0, %v110
    %v112 = vmul.f32 %v109, %v111
    %v113 = vadd.f32 %v109, %v112
    %vm114 = vweird.f32 %v107
    %vm115 = vweird.f32 %v109
    %vm116 = vmor %vm114, %vm115
    %v117 = vsel %vm116, %v109, %v113
    %v118 = vand.u32 2147483647, %v107
    %vm119 = vcmp.eq.f32.partialorder %v118, 8.507059e+37
    %v120 = vand.u32 %v107, 2147483648
    %v121 = vor.u32 1.1754944e-38, %v120
    %v122 = vsel %vm119, %v121, %v117
    %v123 = vmul.f32 1.0, %v122
    %v124 = vrcp.pop %v108
    %v125 = vmul.f32 %v108, %v124
    %v126 = vsub.f32 1.0, %v125
    %v127 = vmul.f32 %v124, %v126
    %v128 = vadd.f32 %v124, %v127
    %vm129 = vweird.f32 %v108
    %vm130 = vweird.f32 %v124
    %vm131 = vmor %vm129, %vm130
    %v132 = vsel %vm131, %v124, %v128
    %v133 = vand.u32 2147483647, %v108
    %vm134 = vcmp.eq.f32.partialorder %v133, 8.507059e+37
    %v135 = vand.u32 %v108, 2147483648
    %v136 = vor.u32 1.1754944e-38, %v135
    %v137 = vsel %vm134, %v136, %v132
    %v138 = vmul.f32 1.0, %v137
    %vm139 = vcmask 130048
    %140 = vst.msk [vmem:[#allocation2] sm:$0xff] %vm139, %v123
    %141 = vst.msk [vmem:[#allocation2 + $0x8] sm:$0xff] %vm139, %v138
    // Predicated region
    $region18: #{_lambda_.4} parent=1 // pred_check
      _
    $region19: #{_lambda_.4} parent=1 // pred_check_branch
      %143 = sbr.rel (0) target = $region21
    $region20: #{_lambda_.4} parent=1 // pred_region
      %145 = vsyncadd [#allocation3], 0
      %s146 = sshll.u32 [#allocation2], 4
      %s147 = int_to_ptr.vmem [resolvable:$true] %s146
      %s148 = sshll.u32 %s4, 4
      %s149 = int_to_ptr.hbm [resolvable:$true] %s148
      %154 = dma.vmem_to_hbm [thread:$0]  %s147, 256, %s149, [#allocation3], 128, 128, 8
    $region21: #{_lambda_.4} parent=1 // pred_fallthru
      _
    // Predicated region
    $region22: #{_lambda_.4} parent=1 // pred_check
      _
    $region23: #{_lambda_.4} parent=1 // pred_check_branch
      %156 = sbr.rel (0) target = $region25
    $region24: #{_lambda_.4} parent=1 // pred_region
      %158 = dma.done [#allocation3], 256
    $region25: #{_lambda_.4} parent=1 // pred_fallthru
      _
    %159 = vsyncpa [#allocation3], 1

// kernel: _lambda_.5
$region0: #{_lambda_.5}
  #allocation0 [shape = 'u32[]', space=smem, size = 0x4, offset = 0x4, fixed_abs, tag = 'smem constant byte address 0x4 - core index']
  #allocation1 [shape = 'u32[72,128]{1,0:T(1,128)}', space=vmem, size = 0x9000, scoped, tag = 'internal scratch']
  %s0 = inlined_call_operand.vmem [shape: f32[16,128], index: 0, kind: input, shape index: {}]
  %s1 = inlined_call_operand.vmem [shape: f32[8,128], index: 1, kind: input, shape index: {}]
  %s2 = inlined_call_operand.vmem [shape: f32[16,1], index: 2, kind: input, shape index: {}]
  %s3 = inlined_call_operand.vmem [shape: f32[1,8], index: 3, kind: input, shape index: {}]
  %s4 = inlined_call_operand.vmem [shape: f32[16,8], index: 4, kind: output, shape index: {}]
  %s5 = sld [smem:[#allocation0]]
  $region26: #{_lambda_.5} parent=0
    _
  %s7 = ssub.s32 1, %s5
  %s8 = scalar_select 0, %s7, %s5
  // Predicated region
  $region2: #{_lambda_.5} parent=0 // pred_check
    _
  $region3: #{_lambda_.5} parent=0 // pred_check_branch
    %10 = sbr.rel (0) target = $region5
  $region4: #{_lambda_.5} parent=0 // pred_region
    _
  $region5: #{_lambda_.5} parent=0 // pred_fallthru
    _
  // Predicated region
  $region6: #{_lambda_.5} parent=0 // pred_check
    _
  $region7: #{_lambda_.5} parent=0 // pred_check_branch
    %12 = sbr.rel (0) target = $region9
  $region8: #{_lambda_.5} parent=0 // pred_region
    _
  $region9: #{_lambda_.5} parent=0 // pred_fallthru
    _
  // Predicated region
  $region10: #{_lambda_.5} parent=0 // pred_check
    _
  $region11: #{_lambda_.5} parent=0 // pred_check_branch
    %14 = sbr.rel (0) target = $region13
  $region12: #{_lambda_.5} parent=0 // pred_region
    _
  $region13: #{_lambda_.5} parent=0 // pred_fallthru
    _
  // Predicated region
  $region14: #{_lambda_.5} parent=0 // pred_check
    _
  $region15: #{_lambda_.5} parent=0 // pred_check_branch
    %16 = sbr.rel (0) target = $region17
  $region16: #{_lambda_.5} parent=0 // pred_region
    _
  $region17: #{_lambda_.5} parent=0 // pred_fallthru
    _
  %v17 = vld [vmem:[%s0] sm:$0xff]
  %v18 = vld [vmem:[%s0 + $0x8] sm:$0xff]
  %v19 = vld [vmem:[%s1] sm:$0xff]
  %20 = vmatpush.xpose.msra.mxu0 0.0
  %21 = vmatpush.xpose.msra.mxu0 0.0
  %22 = vmatpush.xpose.msra.mxu0 0.0
  %23 = vmatpush.xpose.msra.mxu0 0.0
  %24 = vmatpush.xpose.msra.mxu0 0.0
  %25 = vmatpush.xpose.msra.mxu0 0.0
  %26 = vmatpush.xpose.msra.mxu0 0.0
  %27 = vmatpush.xpose.msra.mxu0 0.0
  %28 = vmatpush.xpose.msra.mxu0 0.0
  %29 = vmatpush.xpose.msra.mxu0 0.0
  %30 = vmatpush.xpose.msra.mxu0 0.0
  %31 = vmatpush.xpose.msra.mxu0 0.0
  %32 = vmatpush.xpose.msra.mxu0 0.0
  %33 = vmatpush.xpose.msra.mxu0 0.0
  %34 = vmatpush.xpose.msra.mxu0 0.0
  %35 = vmatpush.xpose.msra.mxu0 %v19
  %36 = vmatmul.f32.gmra.mxu0 %v17
  %v37 = vpop.f32.mrf.mxu0
  %v38 = vadd.f32 0.0, %v37
  %39 = vmatmul.f32.gmra.mxu0 %v18
  %v40 = vpop.f32.mrf.mxu0
  %v41 = vadd.f32 0.0, %v40
  %42 = vdwg.mxu0
  %v43 = vld [vmem:[%s2] sm:$0xff]
  %v44 = vld [vmem:[%s2 + $0x8] sm:$0xff]
  %v45 = vld [vmem:[%s3] sm:$0x1]
  %47 = vset.pattern.permute.xlu0 0
  %48 = vperm.xlu0 %47, %v43
  %v49 = vpop.permute.xlu0 %48
  %52 = vset.pattern.permute.xlu0 0
  %53 = vperm.xlu0 %52, %v44
  %v54 = vpop.permute.xlu0 %53
  %v57 = vperm.slane %v45, 0
  %v59 = vadd.f32 %v49, %v57
  %v60 = vadd.f32 %v54, %v57
  %v61 = vmul.f32 %v38, 2.0
  %v62 = vmul.f32 %v41, 2.0
  %v63 = vsub.f32 %v59, %v61
  %v64 = vsub.f32 %v60, %v62
  %v65 = vmax.f32 %v63, 0.0
  %v66 = vmax.f32 %v64, 0.0
  %v67 = vrsqrt.pop %v65
  %v68 = vmul.f32 %v67, %v65
  %v69 = vmul.f32 %v68, %v67
  %v70 = vmul.f32 0.5, %v69
  %v71 = vsub.f32 1.5, %v70
  %v72 = vmul.f32 %v67, %v71
  %v73 = vmul.f32 %v65, %v72
  %vm74 = vcmp.eq.f32.partialorder %v65, inf
  %v75 = vsel %vm74, %v65, %v73
  %vm76 = vcmp.eq.f32.partialorder %v65, 0.0
  %v77 = vand.u32 %v65, 2147483648
  %v78 = vsel %vm76, %v77, %v75
  %v79 = vrsqrt.pop %v66
  %v80 = vmul.f32 %v79, %v66
  %v81 = vmul.f32 %v80, %v79
  %v82 = vmul.f32 0.5, %v81
  %v83 = vsub.f32 1.5, %v82
  %v84 = vmul.f32 %v79, %v83
  %v85 = vmul.f32 %v66, %v84
  %vm86 = vcmp.eq.f32.partialorder %v66, inf
  %v87 = vsel %vm86, %v66, %v85
  %vm88 = vcmp.eq.f32.partialorder %v66, 0.0
  %v89 = vand.u32 %v66, 2147483648
  %v90 = vsel %vm88, %v89, %v87
  %v91 = vadd.f32 %v78, 1e-08
  %v92 = vadd.f32 %v90, 1e-08
  %v93 = vmul.f32 %v91, 1.65
  %v94 = vmul.f32 %v92, 1.65
  %v95 = vrcp.pop %v93
  %v96 = vrcp.pop %v94
  %v97 = vsub.f32 %v95, 10.0
  %v98 = vsub.f32 %v96, 10.0
  %v99 = vxor.u32 %v97, 2147483648
  %v100 = vxor.u32 %v98, 2147483648
  %v101 = vmul.f32 %v99, 1.442695
  %v102 = vpow.pop %v101
  %v103 = vmul.f32 %v100, 1.442695
  %v104 = vpow.pop %v103
  %v105 = vadd.f32 %v102, 1.0
  %v106 = vadd.f32 %v104, 1.0
  %v107 = vrcp.pop %v105
  %v108 = vmul.f32 %v105, %v107
  %v109 = vsub.f32 1.0, %v108
  %v110 = vmul.f32 %v107, %v109
  %v111 = vadd.f32 %v107, %v110
  %vm112 = vweird.f32 %v105
  %vm113 = vweird.f32 %v107
  %vm114 = vmor %vm112, %vm113
  %v115 = vsel %vm114, %v107, %v111
  %v116 = vand.u32 2147483647, %v105
  %vm117 = vcmp.eq.f32.partialorder %v116, 8.507059e+37
  %v118 = vand.u32 %v105, 2147483648
  %v119 = vor.u32 1.1754944e-38, %v118
  %v120 = vsel %vm117, %v119, %v115
  %v121 = vmul.f32 1.0, %v120
  %v122 = vrcp.pop %v106
  %v123 = vmul.f32 %v106, %v122
  %v124 = vsub.f32 1.0, %v123
  %v125 = vmul.f32 %v122, %v124
  %v126 = vadd.f32 %v122, %v125
  %vm127 = vweird.f32 %v106
  %vm128 = vweird.f32 %v122
  %vm129 = vmor %vm127, %vm128
  %v130 = vsel %vm129, %v122, %v126
  %v131 = vand.u32 2147483647, %v106
  %vm132 = vcmp.eq.f32.partialorder %v131, 8.507059e+37
  %v133 = vand.u32 %v106, 2147483648
  %v134 = vor.u32 1.1754944e-38, %v133
  %v135 = vsel %vm132, %v134, %v130
  %v136 = vmul.f32 1.0, %v135
  %vm137 = vcmask 64512
  %138 = vst.msk [vmem:[%s4] sm:$0xff] %vm137, %v121
  %139 = vst.msk [vmem:[%s4 + $0x8] sm:$0xff] %vm137, %v136
  // Predicated region
  $region18: #{_lambda_.5} parent=0 // pred_check
    _
  $region19: #{_lambda_.5} parent=0 // pred_check_branch
    %141 = sbr.rel (0) target = $region21
  $region20: #{_lambda_.5} parent=0 // pred_region
    _
  $region21: #{_lambda_.5} parent=0 // pred_fallthru
    _
  // Predicated region
  $region22: #{_lambda_.5} parent=0 // pred_check
    _
  $region23: #{_lambda_.5} parent=0 // pred_check_branch
    %143 = sbr.rel (0) target = $region25
  $region24: #{_lambda_.5} parent=0 // pred_region
    _
  $region25: #{_lambda_.5} parent=0 // pred_fallthru
    _

// kernel: _lambda_.3
$region0: #{_lambda_.3}
  #allocation0 [shape = 'u32[]', space=smem, size = 0x4, offset = 0x4, fixed_abs, tag = 'smem constant byte address 0x4 - core index']
  #allocation1 [shape = 'u32[72,128]{1,0:T(1,128)}', space=vmem, size = 0x9000, scoped, tag = 'internal scratch']
  %s0 = inlined_call_operand.vmem [shape: bf16[16,32], index: 0, kind: input, shape index: {}]
  %s1 = inlined_call_operand.vmem [shape: bf16[16,16], index: 1, kind: input, shape index: {}]
  %s2 = inlined_call_operand.vmem [shape: bf16[32,128], index: 2, kind: input, shape index: {}]
  %s3 = inlined_call_operand.hbm [shape: bf16[128,128], index: 3, kind: input, shape index: {}]
  %s4 = inlined_call_operand.vmem [shape: bf16[8,16], index: 4, kind: input, shape index: {}]
  %s5 = inlined_call_operand.vmem [shape: bf16[16,128], index: 5, kind: input, shape index: {}]
  %s6 = inlined_call_operand.vmem [shape: f32[1,128], index: 6, kind: input, shape index: {}]
  %s7 = inlined_call_operand.vmem [shape: f32[1,128], index: 7, kind: input, shape index: {}]
  %s8 = inlined_call_operand.vmem [shape: f32[1,128], index: 8, kind: input, shape index: {}]
  %s9 = inlined_call_operand.hbm [shape: bf16[128,128], index: 9, kind: input, shape index: {}]
  %s10 = inlined_call_operand.vmem [shape: f32[1,128], index: 10, kind: input, shape index: {}]
  %s11 = inlined_call_operand.vmem [shape: f32[16,128], index: 11, kind: output, shape index: {0}]
  %s12 = inlined_call_operand.vmem [shape: f32[8,128], index: 12, kind: output, shape index: {1}]
  %s13 = inlined_call_operand.vmem [shape: f32[16,1], index: 13, kind: output, shape index: {2}]
  %s14 = inlined_call_operand.vmem [shape: f32[1,16], index: 14, kind: output, shape index: {3}]
  %s15 = inlined_call_operand.vmem [shape: f32[1,8], index: 15, kind: output, shape index: {4}]
  %16 = xla_tuple %s11, %s12, %s13, %s14, %s15
  %s17 = sld [smem:[#allocation0]]
  $region94: #{_lambda_.3} parent=0
    _
  %s19 = ssub.s32 1, %s17
  %s20 = scalar_select 0, %s19, %s17
  $region1: #{_lambda_.3} parent=0
    #allocation2 [shape = 'u8[32768]{0}', space=vmem, size = 0x8000, scoped, tag = 'input window, operand 3, single buffered']
    #allocation3 [shape = 's32[1]{0}', space=sflag, size = 0x4, scoped, tag = 'scoped memory for _lambda_.3']
    #allocation4 [shape = 'u8[32768]{0}', space=vmem, size = 0x8000, scoped, tag = 'input window, operand 9, single buffered']
    #allocation5 [shape = 's32[1]{0}', space=sflag, size = 0x4, scoped, tag = 'scoped memory for _lambda_.3']
    %21 = vsyncpa [#allocation3], 0
    %22 = vsyncpa [#allocation5], 0
    // Predicated region
    $region2: #{_lambda_.3} parent=1 // pred_check
      _
    $region3: #{_lambda_.3} parent=1 // pred_check_branch
      %24 = sbr.rel (0) target = $region5
    $region4: #{_lambda_.3} parent=1 // pred_region
      _
    $region5: #{_lambda_.3} parent=1 // pred_fallthru
      _
    // Predicated region
    $region6: #{_lambda_.3} parent=1 // pred_check
      _
    $region7: #{_lambda_.3} parent=1 // pred_check_branch
      %26 = sbr.rel (0) target = $region9
    $region8: #{_lambda_.3} parent=1 // pred_region
      _
    $region9: #{_lambda_.3} parent=1 // pred_fallthru
      _
    // Predicated region
    $region10: #{_lambda_.3} parent=1 // pred_check
      _
    $region11: #{_lambda_.3} parent=1 // pred_check_branch
      %28 = sbr.rel (0) target = $region13
    $region12: #{_lambda_.3} parent=1 // pred_region
      _
    $region13: #{_lambda_.3} parent=1 // pred_fallthru
      _
    // Predicated region
    $region14: #{_lambda_.3} parent=1 // pred_check
      _
    $region15: #{_lambda_.3} parent=1 // pred_check_branch
      %30 = sbr.rel (0) target = $region17
    $region16: #{_lambda_.3} parent=1 // pred_region
      %32 = vsyncadd [#allocation3], 0
      %s33 = sshll.u32 %s3, 4
      %s34 = int_to_ptr.hbm [resolvable:$true] %s33
      %s35 = sshll.u32 [#allocation2], 4
      %s36 = int_to_ptr.vmem [resolvable:$true] %s35
      %41 = dma.hbm_to_vmem [thread:$0]  %s34, 1024, %s36, [#allocation3], 64, 64, 4
    $region17: #{_lambda_.3} parent=1 // pred_fallthru
      _
    // Predicated region
    $region18: #{_lambda_.3} parent=1 // pred_check
      _
    $region19: #{_lambda_.3} parent=1 // pred_check_branch
      %43 = sbr.rel (0) target = $region21
    $region20: #{_lambda_.3} parent=1 // pred_region
      _
    $region21: #{_lambda_.3} parent=1 // pred_fallthru
      _
    // Predicated region
    $region22: #{_lambda_.3} parent=1 // pred_check
      _
    $region23: #{_lambda_.3} parent=1 // pred_check_branch
      %45 = sbr.rel (0) target = $region25
    $region24: #{_lambda_.3} parent=1 // pred_region
      _
    $region25: #{_lambda_.3} parent=1 // pred_fallthru
      _
    // Predicated region
    $region26: #{_lambda_.3} parent=1 // pred_check
      _
    $region27: #{_lambda_.3} parent=1 // pred_check_branch
      %47 = sbr.rel (0) target = $region29
    $region28: #{_lambda_.3} parent=1 // pred_region
      _
    $region29: #{_lambda_.3} parent=1 // pred_fallthru
      _
    // Predicated region
    $region30: #{_lambda_.3} parent=1 // pred_check
      _
    $region31: #{_lambda_.3} parent=1 // pred_check_branch
      %49 = sbr.rel (0) target = $region33
    $region32: #{_lambda_.3} parent=1 // pred_region
      _
    $region33: #{_lambda_.3} parent=1 // pred_fallthru
      _
    // Predicated region
    $region34: #{_lambda_.3} parent=1 // pred_check
      _
    $region35: #{_lambda_.3} parent=1 // pred_check_branch
      %51 = sbr.rel (0) target = $region37
    $region36: #{_lambda_.3} parent=1 // pred_region
      _
    $region37: #{_lambda_.3} parent=1 // pred_fallthru
      _
    // Predicated region
    $region38: #{_lambda_.3} parent=1 // pred_check
      _
    $region39: #{_lambda_.3} parent=1 // pred_check_branch
      %53 = sbr.rel (0) target = $region41
    $region40: #{_lambda_.3} parent=1 // pred_region
      %55 = vsyncadd [#allocation5], 0
      %s56 = sshll.u32 %s9, 4
      %s57 = int_to_ptr.hbm [resolvable:$true] %s56
      %s58 = sshll.u32 [#allocation4], 4
      %s59 = int_to_ptr.vmem [resolvable:$true] %s58
      %64 = dma.hbm_to_vmem [thread:$0]  %s57, 1024, %s59, [#allocation5], 64, 64, 4
    $region41: #{_lambda_.3} parent=1 // pred_fallthru
      _
    // Predicated region
    $region42: #{_lambda_.3} parent=1 // pred_check
      _
    $region43: #{_lambda_.3} parent=1 // pred_check_branch
      %66 = sbr.rel (0) target = $region45
    $region44: #{_lambda_.3} parent=1 // pred_region
      _
    $region45: #{_lambda_.3} parent=1 // pred_fallthru
      _
    // Predicated region
    $region46: #{_lambda_.3} parent=1 // pred_check
      _
    $region47: #{_lambda_.3} parent=1 // pred_check_branch
      %68 = sbr.rel (0) target = $region49
    $region48: #{_lambda_.3} parent=1 // pred_region
      %70 = dma.done [#allocation3], 1024
    $region49: #{_lambda_.3} parent=1 // pred_fallthru
      _
    // Predicated region
    $region50: #{_lambda_.3} parent=1 // pred_check
      _
    $region51: #{_lambda_.3} parent=1 // pred_check_branch
      %72 = sbr.rel (0) target = $region53
    $region52: #{_lambda_.3} parent=1 // pred_region
      %74 = dma.done [#allocation5], 1024
    $region53: #{_lambda_.3} parent=1 // pred_fallthru
      _
    %v76 = vld [vmem:[%s0] sm:$0xf]
    %v77 = vld [vmem:[%s0 + $0x4] sm:$0xf]
    %v78 = vld [vmem:[%s2] sm:$0xf]
    %v79 = vld [vmem:[%s2 + $0x4] sm:$0xf]
    %v80 = vld [vmem:[%s2 + $0x8] sm:$0xf]
    %v81 = vld [vmem:[%s2 + $0xc] sm:$0xf]
    %v84 = vunpack.c.l.b16 %v76
    %v85 = vunpack.c.l.b16 %v77
    %v86 = vpack.c.b16 %v85, %v84
    %v91 = vunpack.c.l.b16 %v78
    %v92 = vunpack.c.l.b16 %v79
    %v93 = vunpack.c.l.b16 %v80
    %v94 = vunpack.c.l.b16 %v81
    %v95 = vpack.c.b16 %v92, %v91
    %v96 = vpack.c.b16 %v94, %v93
    %vm99 = vcmask 261120
    %v101 = vsel %vm99, %v86, 0
    %103 = vmatpush.bf16.msra.mxu0 0
    %104 = vmatpush.bf16.msra.mxu0 0
    %105 = vmatpush.bf16.msra.mxu0 0
    %106 = vmatpush.bf16.msra.mxu0 0
    %107 = vmatpush.bf16.msra.mxu0 0
    %108 = vmatpush.bf16.msra.mxu0 0
    %109 = vmatpush.bf16.msra.mxu0 %v96
    %110 = vmatpush.bf16.msra.mxu0 %v95
    %111 = vmatmul.bf16.gmra.mxu0 %v101
    %v112 = vpop.f32.mrf.mxu0
    %v113 = vadd.f32 0.0, %v112
    %v114 = vpop.f32.mrf.mxu0
    %v115 = vadd.f32 0.0, %v114
    %116 = vdwg.mxu0
    %v117 = vld [vmem:[%s1] sm:$0xf]
    %v118 = vld [vmem:[%s1 + $0x4] sm:$0xf]
    %v119 = vpack.c.bf16 %v115, %v113
    %v122 = vunpack.c.l.b16 %v117
    %v123 = vunpack.c.l.b16 %v118
    %v124 = vpack.c.b16 %v123, %v122
    %vm125 = vcmask 130048
    %v127 = vsel %vm125, %v124, 0
    %129 = vmatpush.bf16.msra.mxu0 0
    %130 = vmatpush.bf16.msra.mxu0 0
    %131 = vmatpush.bf16.msra.mxu0 0
    %132 = vmatpush.bf16.msra.mxu0 0
    %133 = vmatpush.bf16.msra.mxu0 0
    %134 = vmatpush.bf16.msra.mxu0 0
    %135 = vmatpush.bf16.msra.mxu0 0
    %136 = vmatpush.bf16.msra.mxu0 %v119
    %137 = vmatmul.bf16.gmra.mxu0 %v127
    %v138 = vpop.f32.mrf.mxu0
    %v139 = vadd.f32 0.0, %v138
    %v140 = vpop.f32.mrf.mxu0
    %v141 = vadd.f32 0.0, %v140
    %142 = vdwg.mxu0
    %v143 = vmax.f32 %v139, 0.0
    %v144 = vmax.f32 %v141, 0.0
    %v145 = vpack.c.bf16 %v144, %v143
    %v146 = vld [vmem:[#allocation2] sm:$0xf]
    %v147 = vld [vmem:[#allocation2 + $0x4] sm:$0xf]
    %v148 = vld [vmem:[#allocation2 + $0x8] sm:$0xf]
    %v149 = vld [vmem:[#allocation2 + $0xc] sm:$0xf]
    %v150 = vld [vmem:[#allocation2 + $0x10] sm:$0xf]
    %v151 = vld [vmem:[#allocation2 + $0x14] sm:$0xf]
    %v152 = vld [vmem:[#allocation2 + $0x18] sm:$0xf]
    %v153 = vld [vmem:[#allocation2 + $0x1c] sm:$0xf]
    %v154 = vld [vmem:[#allocation2 + $0x20] sm:$0xf]
    %v155 = vld [vmem:[#allocation2 + $0x24] sm:$0xf]
    %v156 = vld [vmem:[#allocation2 + $0x28] sm:$0xf]
    %v157 = vld [vmem:[#allocation2 + $0x2c] sm:$0xf]
    %v158 = vld [vmem:[#allocation2 + $0x30] sm:$0xf]
    %v159 = vld [vmem:[#allocation2 + $0x34] sm:$0xf]
    %v160 = vld [vmem:[#allocation2 + $0x38] sm:$0xf]
    %v161 = vld [vmem:[#allocation2 + $0x3c] sm:$0xf]
    %v178 = vunpack.c.l.b16 %v146
    %v179 = vunpack.c.l.b16 %v147
    %v180 = vunpack.c.l.b16 %v148
    %v181 = vunpack.c.l.b16 %v149
    %v182 = vunpack.c.l.b16 %v150
    %v183 = vunpack.c.l.b16 %v151
    %v184 = vunpack.c.l.b16 %v152
    %v185 = vunpack.c.l.b16 %v153
    %v186 = vunpack.c.l.b16 %v154
    %v187 = vunpack.c.l.b16 %v155
    %v188 = vunpack.c.l.b16 %v156
    %v189 = vunpack.c.l.b16 %v157
    %v190 = vunpack.c.l.b16 %v158
    %v191 = vunpack.c.l.b16 %v159
    %v192 = vunpack.c.l.b16 %v160
    %v193 = vunpack.c.l.b16 %v161
    %v194 = vpack.c.b16 %v179, %v178
    %v195 = vpack.c.b16 %v181, %v180
    %v196 = vpack.c.b16 %v183, %v182
    %v197 = vpack.c.b16 %v185, %v184
    %v198 = vpack.c.b16 %v187, %v186
    %v199 = vpack.c.b16 %v189, %v188
    %v200 = vpack.c.b16 %v191, %v190
    %v201 = vpack.c.b16 %v193, %v192
    %210 = vmatpush.bf16.msra.mxu0 %v201
    %211 = vmatpush.bf16.msra.mxu0 %v200
    %212 = vmatpush.bf16.msra.mxu0 %v199
    %213 = vmatpush.bf16.msra.mxu0 %v198
    %214 = vmatpush.bf16.msra.mxu0 %v197
    %215 = vmatpush.bf16.msra.mxu0 %v196
    %216 = vmatpush.bf16.msra.mxu0 %v195
    %217 = vmatpush.bf16.msra.mxu0 %v194
    %218 = vmatmul.bf16.gmra.mxu0 %v145
    %v219 = vpop.f32.mrf.mxu0
    %v220 = vadd.f32 0.0, %v219
    %v221 = vpop.f32.mrf.mxu0
    %v222 = vadd.f32 0.0, %v221
    %223 = vdwg.mxu0
    %v224 = vpack.c.bf16 %v222, %v220
    %225 = vmatpush.bf16.msra.mxu0 0
    %226 = vmatpush.bf16.msra.mxu0 0
    %227 = vmatpush.bf16.msra.mxu0 0
    %228 = vmatpush.bf16.msra.mxu0 0
    %229 = vmatpush.bf16.msra.mxu0 0
    %230 = vmatpush.bf16.msra.mxu0 0
    %231 = vmatpush.bf16.msra.mxu0 0
    %232 = vmatpush.bf16.msra.mxu0 %v224
    %233 = vmatmul.bf16.gmra.mxu0 %v127
    %v234 = vpop.f32.mrf.mxu0
    %v235 = vadd.f32 0.0, %v234
    %v236 = vpop.f32.mrf.mxu0
    %v237 = vadd.f32 0.0, %v236
    %238 = vdwg.mxu0
    %239 = vst [vmem:[%s11] sm:$0xff] %v235
    %240 = vst [vmem:[%s11 + $0x8] sm:$0xff] %v237
    %v241 = vld [vmem:[%s4] sm:$0xf]
    %v242 = vld [vmem:[%s5] sm:$0xf]
    %v243 = vld [vmem:[%s5 + $0x4] sm:$0xf]
    %v244 = vld [vmem:[%s6] sm:$0x1]
    %v246 = vperm.slane %v244, 0
    %v250 = vunpack.c.l.b16 %v242
    %v251 = vunpack.c.l.b16 %v243
    %v252 = vpack.c.b16 %v251, %v250
    %v255 = vsel %vm125, %v241, 0
    %257 = vmatpush.bf16.msra.mxu0 0
    %258 = vmatpush.bf16.msra.mxu0 0
    %259 = vmatpush.bf16.msra.mxu0 0
    %260 = vmatpush.bf16.msra.mxu0 0
    %261 = vmatpush.bf16.msra.mxu0 0
    %262 = vmatpush.bf16.msra.mxu0 0
    %263 = vmatpush.bf16.msra.mxu0 0
    %264 = vmatpush.bf16.msra.mxu0 %v252
    %265 = vmatmul.bf16.gmra.mxu0 %v255
    %v266 = vpop.f32.mrf.mxu0
    %v267 = vadd.f32 %v246, %v266
    %v268 = vpop.f32.mrf.mxu0
    %269 = vdwg.mxu0
    %v270 = vmax.f32 %v267, 0.0
    %v271 = vld [vmem:[%s7] sm:$0x1]
    %v273 = vperm.slane %v271, 0
    %v275 = vmul.f32 %v270, %v273
    %v276 = vld [vmem:[%s8] sm:$0x1]
    %v278 = vperm.slane %v276, 0
    %v280 = vadd.f32 %v275, %v278
    %v281 = vpack.c.bf16 %v280, %v280
    %v282 = vld [vmem:[#allocation4] sm:$0xf]
    %v283 = vld [vmem:[#allocation4 + $0x4] sm:$0xf]
    %v284 = vld [vmem:[#allocation4 + $0x8] sm:$0xf]
    %v285 = vld [vmem:[#allocation4 + $0xc] sm:$0xf]
    %v286 = vld [vmem:[#allocation4 + $0x10] sm:$0xf]
    %v287 = vld [vmem:[#allocation4 + $0x14] sm:$0xf]
    %v288 = vld [vmem:[#allocation4 + $0x18] sm:$0xf]
    %v289 = vld [vmem:[#allocation4 + $0x1c] sm:$0xf]
    %v290 = vld [vmem:[#allocation4 + $0x20] sm:$0xf]
    %v291 = vld [vmem:[#allocation4 + $0x24] sm:$0xf]
    %v292 = vld [vmem:[#allocation4 + $0x28] sm:$0xf]
    %v293 = vld [vmem:[#allocation4 + $0x2c] sm:$0xf]
    %v294 = vld [vmem:[#allocation4 + $0x30] sm:$0xf]
    %v295 = vld [vmem:[#allocation4 + $0x34] sm:$0xf]
    %v296 = vld [vmem:[#allocation4 + $0x38] sm:$0xf]
    %v297 = vld [vmem:[#allocation4 + $0x3c] sm:$0xf]
    %v298 = vld [vmem:[%s10] sm:$0x1]
    %v300 = vperm.slane %v298, 0
    %v318 = vunpack.c.l.b16 %v282
    %v319 = vunpack.c.l.b16 %v283
    %v320 = vunpack.c.l.b16 %v284
    %v321 = vunpack.c.l.b16 %v285
    %v322 = vunpack.c.l.b16 %v286
    %v323 = vunpack.c.l.b16 %v287
    %v324 = vunpack.c.l.b16 %v288
    %v325 = vunpack.c.l.b16 %v289
    %v326 = vunpack.c.l.b16 %v290
    %v327 = vunpack.c.l.b16 %v291
    %v328 = vunpack.c.l.b16 %v292
    %v329 = vunpack.c.l.b16 %v293
    %v330 = vunpack.c.l.b16 %v294
    %v331 = vunpack.c.l.b16 %v295
    %v332 = vunpack.c.l.b16 %v296
    %v333 = vunpack.c.l.b16 %v297
    %v334 = vpack.c.b16 %v319, %v318
    %v335 = vpack.c.b16 %v321, %v320
    %v336 = vpack.c.b16 %v323, %v322
    %v337 = vpack.c.b16 %v325, %v324
    %v338 = vpack.c.b16 %v327, %v326
    %v339 = vpack.c.b16 %v329, %v328
    %v340 = vpack.c.b16 %v331, %v330
    %v341 = vpack.c.b16 %v333, %v332
    %350 = vmatpush.bf16.msra.mxu0 %v341
    %351 = vmatpush.bf16.msra.mxu0 %v340
    %352 = vmatpush.bf16.msra.mxu0 %v339
    %353 = vmatpush.bf16.msra.mxu0 %v338
    %354 = vmatpush.bf16.msra.mxu0 %v337
    %355 = vmatpush.bf16.msra.mxu0 %v336
    %356 = vmatpush.bf16.msra.mxu0 %v335
    %357 = vmatpush.bf16.msra.mxu0 %v334
    %358 = vmatmul.bf16.gmra.mxu0 %v281
    %v359 = vpop.f32.mrf.mxu0
    %v360 = vadd.f32 %v300, %v359
    %v361 = vpop.f32.mrf.mxu0
    %362 = vdwg.mxu0
    %363 = vst [vmem:[%s12] sm:$0xff] %v360
    %v364 = vmul.f32 %v235, %v235
    %v365 = vmul.f32 %v237, %v237
    %v366 = vmul.f32 %v360, %v360
    %367 = vadd.xlane.f32.xlu0 %v364
    %v368 = vpop.xlane.xlu0 %367
    %369 = vadd.xlane.f32.xlu0 %v365
    %v370 = vpop.xlane.xlu0 %369
    %vm371 = vcmask 7168
    %372 = vst.msk [vmem:[%s13] sm:$0xff] %vm371, %v368
    %373 = vst.msk [vmem:[%s13 + $0x8] sm:$0xff] %vm371, %v370
    %374 = vmatpush.xpose.msra.mxu0 0.0
    %375 = vmatpush.xpose.msra.mxu0 0.0
    %376 = vmatpush.xpose.msra.mxu0 0.0
    %377 = vmatpush.xpose.msra.mxu0 0.0
    %378 = vmatpush.xpose.msra.mxu0 0.0
    %379 = vmatpush.xpose.msra.mxu0 0.0
    %380 = vmatpush.xpose.msra.mxu0 0.0
    %381 = vmatpush.xpose.msra.mxu0 0.0
    %382 = vmatpush.xpose.msra.mxu0 0.0
    %383 = vmatpush.xpose.msra.mxu0 0.0
    %384 = vmatpush.xpose.msra.mxu0 0.0
    %385 = vmatpush.xpose.msra.mxu0 0.0
    %386 = vmatpush.xpose.msra.mxu0 0.0
    %387 = vmatpush.xpose.msra.mxu0 0.0
    %388 = vmatpush.xpose.msra.mxu0 %v365
    %389 = vmatpush.xpose.msra.mxu0 %v364
    %390 = vmatmul.f32.gmra.mxu0 1.0
    %v391 = vpop.f32.mrf.mxu0
    %v392 = vadd.f32 0.0, %v391
    %393 = vdwg.mxu0
    %vm394 = vcmask 122880
    %395 = vst.msk [vmem:[%s14] sm:$0x1] %vm394, %v392
    %396 = vmatpush.xpose.msra.mxu0 0.0
    %397 = vmatpush.xpose.msra.mxu0 0.0
    %398 = vmatpush.xpose.msra.mxu0 0.0
    %399 = vmatpush.xpose.msra.mxu0 0.0
    %400 = vmatpush.xpose.msra.mxu0 0.0
    %401 = vmatpush.xpose.msra.mxu0 0.0
    %402 = vmatpush.xpose.msra.mxu0 0.0
    %403 = vmatpush.xpose.msra.mxu0 0.0
    %404 = vmatpush.xpose.msra.mxu0 0.0
    %405 = vmatpush.xpose.msra.mxu0 0.0
    %406 = vmatpush.xpose.msra.mxu0 0.0
    %407 = vmatpush.xpose.msra.mxu0 0.0
    %408 = vmatpush.xpose.msra.mxu0 0.0
    %409 = vmatpush.xpose.msra.mxu0 0.0
    %410 = vmatpush.xpose.msra.mxu0 0.0
    %411 = vmatpush.xpose.msra.mxu0 %v366
    %412 = vmatmul.f32.gmra.mxu0 1.0
    %v413 = vpop.f32.mrf.mxu0
    %v414 = vadd.f32 0.0, %v413
    %415 = vdwg.mxu0
    %vm416 = vcmask 57344
    %417 = vst.msk [vmem:[%s15] sm:$0x1] %vm416, %v414
    // Predicated region
    $region54: #{_lambda_.3} parent=1 // pred_check
      _
    $region55: #{_lambda_.3} parent=1 // pred_check_branch
      %419 = sbr.rel (0) target = $region57
    $region56: #{_lambda_.3} parent=1 // pred_region
      _
    $region57: #{_lambda_.3} parent=1 // pred_fallthru
      _
    // Predicated region
    $region58: #{_lambda_.3} parent=1 // pred_check
      _
    $region59: #{_lambda_.3} parent=1 // pred_check_branch
      %421 = sbr.rel (0) target = $region61
    $region60: #{_lambda_.3} parent=1 // pred_region
      _
    $region61: #{_lambda_.3} parent=1 // pred_fallthru
      _
    // Predicated region
    $region62: #{_lambda_.3} parent=1 // pred_check
      _
    $region63: #{_lambda_.3} parent=1 // pred_check_branch
      %423 = sbr.rel (0) target = $region65
    $region64: #{_lambda_.3} parent=1 // pred_region
      _
    $region65: #{_lambda_.3} parent=1 // pred_fallthru
      _
    // Predicated region
    $region66: #{_lambda_.3} parent=1 // pred_check
      _
    $region67: #{_lambda_.3} parent=1 // pred_check_branch
      %425 = sbr.rel (0) target = $region69
    $region68: #{_lambda_.3} parent=1 // pred_region
      _
    $region69: #{_lambda_.3} parent=1 // pred_fallthru
      _
    // Predicated region
    $region70: #{_lambda_.3} parent=1 // pred_check
      _
    $region71: #{_lambda_.3} parent=1 // pred_check_branch
      %427 = sbr.rel (0) target = $region73
    $region72: #{_lambda_.3} parent=1 // pred_region
      _
    $region73: #{_lambda_.3} parent=1 // pred_fallthru
      _
    // Predicated region
    $region74: #{_lambda_.3} parent=1 // pred_check
      _
    $region75: #{_lambda_.3} parent=1 // pred_check_branch
      %429 = sbr.rel (0) target = $region77
    $region76: #{_lambda_.3} parent=1 // pred_region
      _
    $region77: #{_lambda_.3} parent=1 // pred_fallthru
      _
    // Predicated region
    $region78: #{_lambda_.3} parent=1 // pred_check
      _
    $region79: #{_lambda_.3} parent=1 // pred_check_branch
      %431 = sbr.rel (0) target = $region81
    $region80: #{_lambda_.3} parent=1 // pred_region
      _
    $region81: #{_lambda_.3} parent=1 // pred_fallthru
      _
    // Predicated region
    $region82: #{_lambda_.3} parent=1 // pred_check
      _
    $region83: #{_lambda_.3} parent=1 // pred_check_branch
      %433 = sbr.rel (0) target = $region85
    $region84: #{_lambda_.3} parent=1 // pred_region
      _
    $region85: #{_lambda_.3} parent=1 // pred_fallthru
      _
    // Predicated region
    $region86: #{_lambda_.3} parent=1 // pred_check
      _
    $region87: #{_lambda_.3} parent=1 // pred_check_branch
      %435 = sbr.rel (0) target = $region89
    $region88: #{_lambda_.3} parent=1 // pred_region
      _
    $region89: #{_lambda_.3} parent=1 // pred_fallthru
      _
    // Predicated region
    $region90: #{_lambda_.3} parent=1 // pred_check
      _
    $region91: #{_lambda_.3} parent=1 // pred_check_branch
      %437 = sbr.rel (0) target = $region93
    $region92: #{_lambda_.3} parent=1 // pred_region
      _
    $region93: #{_lambda_.3} parent=1 // pred_fallthru
      _
    %438 = vsyncpa [#allocation3], 1
    %439 = vsyncpa [#allocation5], 1

</llo_original>
